<compile_context>
chip_gen: v5e
topology: v5e:2x2
jax: 0.10.0
libtpu: 0.0.40
codegen_flags: <defaults>
</compile_context>

<pallas_src>
import numpy as np
import jax
import jax.numpy as jnp
from jax.experimental import pallas as pl
from jax.experimental.pallas import tpu as pltpu

_LANES = 128
_SUBLANES = 8
_MAX_TILE_R = 512  # 512 x 128 = 65536 anchors per tile, ~0.5 MiB/class plane (f32)


def _make_ce_tile_kernel(num_classes, tile_r):
    """Per-tile CE-with-ignore kernel over a lane-dense [C, tile_r, 128] block."""

    def kernel(logits_ref, labels_ref, sum_ref, cnt_ref):
        labels = labels_ref[...]                                   # [tile_r, 128] i32

        # Load class planes (native dtype in HBM/VMEM, f32 math in-kernel).
        planes = [logits_ref[c].astype(jnp.float32) for c in range(num_classes)]

        # Numerically stable log-sum-exp across class planes (pure VPU/EUP,
        # no cross-lane XLU work).
        m = planes[0]
        for p in planes[1:]:
            m = jnp.maximum(m, p)

        sexp = jnp.exp(planes[0] - m)
        picked = jnp.where(labels == 0, planes[0], 0.0)
        for c in range(1, num_classes):
            sexp = sexp + jnp.exp(planes[c] - m)
            picked = jnp.where(labels == c, planes[c], picked)
        lse = m + jnp.log(sexp)                                    # [tile_r, 128]

        valid = labels != -1                                       # ignore_index = -1
        per_row = jnp.where(valid, lse - picked, 0.0)              # [tile_r, 128]
        cnt = jnp.where(valid, 1.0, 0.0)                           # [tile_r, 128]

        # Reduce sublane groups with plain VPU adds down to one [8, 128] slab
        # per tile (keeps the output store lane-dense, no XLU reduce).
        acc_s = per_row[0:_SUBLANES]
        acc_c = cnt[0:_SUBLANES]
        for g in range(1, tile_r // _SUBLANES):
            acc_s = acc_s + per_row[g * _SUBLANES:(g + 1) * _SUBLANES]
            acc_c = acc_c + cnt[g * _SUBLANES:(g + 1) * _SUBLANES]

        sum_ref[0] = acc_s
        cnt_ref[0] = acc_c

    return kernel


def rpn_class_loss_pallas(rpn_class_logits, labels):
    """rpn_class_logits: [B, N, C] float; labels: [N, K] int (numpy or jnp)."""
    logits = jnp.asarray(rpn_class_logits)[0]                      # [N, C], native dtype
    N, C = logits.shape

    labels_1d = jnp.asarray(np.asarray(labels)[:, 0].astype(np.int32))  # [N] i32

    # --- lane-dense tiling over N -------------------------------------------
    r_needed = -(-N // _LANES)                                     # cdiv(N, 128)
    tile_r = min(_MAX_TILE_R,
                 ((r_needed + _SUBLANES - 1) // _SUBLANES) * _SUBLANES)
    r_total = ((r_needed + tile_r - 1) // tile_r) * tile_r
    n_pad = r_total * _LANES
    num_tiles = r_total // tile_r

    # Layout plumbing (single fused XLA copy): [N, C] -> [C, r_total, 128]
    # class planes; padded anchors get label -1 so they are ignored.
    logits_planes = jnp.pad(jnp.swapaxes(logits, 0, 1),
                            ((0, 0), (0, n_pad - N))).reshape(C, r_total, _LANES)
    labels_2d = jnp.pad(labels_1d, (0, n_pad - N),
                        constant_values=-1).reshape(r_total, _LANES)

    itemsize = np.dtype(logits.dtype).itemsize
    cost = pl.CostEstimate(
        flops=int(n_pad * (6 * C + 8)),
        transcendentals=int(n_pad * (C + 1)),
        bytes_accessed=int(C * n_pad * itemsize + n_pad * 4
                           + num_tiles * _SUBLANES * _LANES * 4 * 2),
    )

    kernel = _make_ce_tile_kernel(C, tile_r)

    partial_sums, partial_cnts = pl.pallas_call(
        kernel,
        out_shape=(
            jax.ShapeDtypeStruct((num_tiles, _SUBLANES, _LANES), jnp.float32),
            jax.ShapeDtypeStruct((num_tiles, _SUBLANES, _LANES), jnp.float32),
        ),
        grid_spec=pltpu.PrefetchScalarGridSpec(
            num_scalar_prefetch=0,
            grid=(num_tiles,),
            in_specs=[
                pl.BlockSpec((C, tile_r, _LANES), lambda i: (0, i, 0)),
                pl.BlockSpec((tile_r, _LANES), lambda i: (i, 0)),
            ],
            out_specs=[
                pl.BlockSpec((1, _SUBLANES, _LANES), lambda i: (i, 0, 0)),
                pl.BlockSpec((1, _SUBLANES, _LANES), lambda i: (i, 0, 0)),
            ],
        ),
        compiler_params=pltpu.CompilerParams(
            dimension_semantics=("parallel",)),
        cost_estimate=cost,
    )(logits_planes, labels_2d)

    # Tiny final reduction + divide in plain JAX (per-tile partials keep the
    # grid axis fully parallel, e.g. across both TensorCores on v7x).
    total = jnp.sum(partial_sums)
    count = jnp.sum(partial_cnts)
    # Mean over non-ignored rows; count == 0 -> NaN, same as PyTorch.
    return total / count


def rpn_loss_forward(rpn_outputs, labels):
    """Mirror of rpn_loss.forward: rpn_outputs = [logits, probs, bbox]."""
    rpn_class_logits = rpn_outputs[0]
    return rpn_class_loss_pallas(rpn_class_logits, labels)


if __name__ == "__main__":
    key = jax.random.PRNGKey(0)
    k_logit, k_bbox, k_lbl = jax.random.split(key, 3)

    # Small but padding-exercising shapes: 1 image, 300 anchors, 2 classes.
    B, N, C = 1, 300, 2
    rpn_class_logits = jax.random.normal(k_logit, (B, N, C), dtype=jnp.float32)
    rpn_probs = jax.nn.softmax(rpn_class_logits, axis=-1)
    rpn_bbox = jax.random.normal(k_bbox, (B, N, 4), dtype=jnp.float32)
    rpn_outputs = [rpn_class_logits, rpn_probs, rpn_bbox]

    # Labels in {-1, 0, 1}: -1 = ignore, others = class id. Column 0 is used.
    labels = np.array(jax.random.randint(k_lbl, (N, 1), -1, C), dtype=np.int64)
    labels[0, 0] = 0  # guarantee at least one valid label

    loss = rpn_loss_forward(rpn_outputs, labels)
    jax.block_until_ready(loss)

    # Cross-check against a pure-JAX reference of CE with ignore_index=-1.
    lg = rpn_class_logits[0].astype(jnp.float32)
    lb = jnp.asarray(labels[:, 0].astype(np.int32))
    valid = lb != -1
    lse = jax.scipy.special.logsumexp(lg, axis=-1)
    picked = jnp.take_along_axis(lg, jnp.clip(lb, 0)[:, None], axis=-1)[:, 0]
    ref = jnp.sum(jnp.where(valid, lse - picked, 0.0)) / jnp.sum(valid)
    assert jnp.allclose(loss, ref, atol=1e-5, rtol=1e-5), (loss, ref)

    print("KERNEL_OK")
</pallas_src>

<mosaic_0001>
module attributes {stable_mosaic.version = 11 : i64} {
  func.func @kernel(%arg0: i32, %arg1: memref<2x8x128xf32, #tpu.memory_space<vmem>>, %arg2: memref<8x128xi32, #tpu.memory_space<vmem>>, %arg3: memref<1x8x128xf32, #tpu.memory_space<vmem>>, %arg4: memref<1x8x128xf32, #tpu.memory_space<vmem>>) attributes {dimension_semantics = [#tpu.dimension_semantics<parallel>], iteration_bounds = array<i64: 1>, scalar_prefetch = 0 : i64, scratch_operands = 0 : i64, tpu.core_type = #tpu.core_type<tc>, window_params = [{transform_indices = @transform_0, window_bounds = array<i64: 2, 8, 128>}, {transform_indices = @transform_1, window_bounds = array<i64: 8, 128>}, {transform_indices = @transform_2, window_bounds = array<i64: 1, 8, 128>}, {transform_indices = @transform_3, window_bounds = array<i64: 1, 8, 128>}]} {
    %c0 = arith.constant 0 : index
    %c0_0 = arith.constant 0 : index
    %0 = vector.load %arg2[%c0, %c0_0] : memref<8x128xi32, #tpu.memory_space<vmem>>, vector<8x128xi32>
    %c0_1 = arith.constant 0 : index
    %c0_2 = arith.constant 0 : index
    %c0_3 = arith.constant 0 : index
    %1 = vector.load %arg1[%c0_1, %c0_2, %c0_3] : memref<2x8x128xf32, #tpu.memory_space<vmem>>, vector<1x8x128xf32>
    %2 = vector.shape_cast %1 : vector<1x8x128xf32> to vector<8x128xf32>
    %c1 = arith.constant 1 : index
    %c0_4 = arith.constant 0 : index
    %c0_5 = arith.constant 0 : index
    %3 = vector.load %arg1[%c1, %c0_4, %c0_5] : memref<2x8x128xf32, #tpu.memory_space<vmem>>, vector<1x8x128xf32>
    %4 = vector.shape_cast %3 : vector<1x8x128xf32> to vector<8x128xf32>
    %5 = arith.maximumf %2, %4 : vector<8x128xf32>
    %6 = arith.subf %2, %5 : vector<8x128xf32>
    %7 = math.exp %6 : vector<8x128xf32>
    %c0_i32 = arith.constant 0 : i32
    %8 = vector.broadcast %c0_i32 : i32 to vector<8x128xi32>
    %9 = arith.cmpi eq, %0, %8 : vector<8x128xi32>
    %cst = arith.constant 0.000000e+00 : f32
    %10 = vector.broadcast %cst : f32 to vector<8x128xf32>
    %11 = arith.select %9, %2, %10 : vector<8x128xi1>, vector<8x128xf32>
    %12 = arith.subf %4, %5 : vector<8x128xf32>
    %13 = math.exp %12 : vector<8x128xf32>
    %14 = arith.addf %7, %13 : vector<8x128xf32>
    %c1_i32 = arith.constant 1 : i32
    %15 = vector.broadcast %c1_i32 : i32 to vector<8x128xi32>
    %16 = arith.cmpi eq, %0, %15 : vector<8x128xi32>
    %17 = arith.select %16, %4, %11 : vector<8x128xi1>, vector<8x128xf32>
    %18 = math.log %14 : vector<8x128xf32>
    %19 = arith.addf %5, %18 : vector<8x128xf32>
    %c-1_i32 = arith.constant -1 : i32
    %20 = vector.broadcast %c-1_i32 : i32 to vector<8x128xi32>
    %21 = arith.cmpi ne, %0, %20 : vector<8x128xi32>
    %22 = arith.subf %19, %17 : vector<8x128xf32>
    %cst_6 = arith.constant 0.000000e+00 : f32
    %23 = vector.broadcast %cst_6 : f32 to vector<8x128xf32>
    %24 = arith.select %21, %22, %23 : vector<8x128xi1>, vector<8x128xf32>
    %cst_7 = arith.constant 1.000000e+00 : f32
    %cst_8 = arith.constant 0.000000e+00 : f32
    %25 = vector.broadcast %cst_7 : f32 to vector<8x128xf32>
    %26 = vector.broadcast %cst_8 : f32 to vector<8x128xf32>
    %27 = arith.select %21, %25, %26 : vector<8x128xi1>, vector<8x128xf32>
    %c0_9 = arith.constant 0 : index
    %c0_10 = arith.constant 0 : index
    %c0_11 = arith.constant 0 : index
    %28 = vector.load %arg3[%c0_9, %c0_10, %c0_11] : memref<1x8x128xf32, #tpu.memory_space<vmem>>, vector<1x8x128xf32>
    %29 = vector.shape_cast %28 : vector<1x8x128xf32> to vector<8x128xf32>
    %30 = vector.shape_cast %24 : vector<8x128xf32> to vector<1x8x128xf32>
    tpu.vector_store %arg3[%c0_9, %c0_10, %c0_11], %30 {strides = array<i32>} : memref<1x8x128xf32, #tpu.memory_space<vmem>>, vector<1x8x128xf32>,
    %c0_12 = arith.constant 0 : index
    %c0_13 = arith.constant 0 : index
    %c0_14 = arith.constant 0 : index
    %31 = vector.load %arg4[%c0_12, %c0_13, %c0_14] : memref<1x8x128xf32, #tpu.memory_space<vmem>>, vector<1x8x128xf32>
    %32 = vector.shape_cast %31 : vector<1x8x128xf32> to vector<8x128xf32>
    %33 = vector.shape_cast %27 : vector<8x128xf32> to vector<1x8x128xf32>
    tpu.vector_store %arg4[%c0_12, %c0_13, %c0_14], %33 {strides = array<i32>} : memref<1x8x128xf32, #tpu.memory_space<vmem>>, vector<1x8x128xf32>,
    return
  }
  func.func @transform_0(%arg0: i32) -> (i32, i32, i32) {
    %c0_i32 = arith.constant 0 : i32
    %c0_i32_0 = arith.constant 0 : i32
    %c0_i32_1 = arith.constant 0 : i32
    return %c0_i32, %arg0, %c0_i32_0 : i32, i32, i32
  }
  func.func @transform_1(%arg0: i32) -> (i32, i32) {
    %c0_i32 = arith.constant 0 : i32
    %c0_i32_0 = arith.constant 0 : i32
    return %arg0, %c0_i32 : i32, i32
  }
  func.func @transform_2(%arg0: i32) -> (i32, i32, i32) {
    %c0_i32 = arith.constant 0 : i32
    %c0_i32_0 = arith.constant 0 : i32
    %c0_i32_1 = arith.constant 0 : i32
    return %arg0, %c0_i32, %c0_i32_0 : i32, i32, i32
  }
  func.func @transform_3(%arg0: i32) -> (i32, i32, i32) {
    %c0_i32 = arith.constant 0 : i32
    %c0_i32_0 = arith.constant 0 : i32
    %c0_i32_1 = arith.constant 0 : i32
    return %arg0, %c0_i32, %c0_i32_0 : i32, i32, i32
  }
}

</mosaic_0001>

<llo_original>
// kernel: tpu_custom_call.1
$region0: #{tpu_custom_call.1}
  #allocation0 [shape = 'u32[]', space=smem, size = 0x4, offset = 0x4, fixed_abs, tag = 'smem constant byte address 0x4 - core index']
  #allocation1 [shape = 'u32[72,128]{1,0:T(1,128)}', space=vmem, size = 0x9000, scoped, tag = 'internal scratch']
  %s0 = inlined_call_operand.hbm [shape: f32[2,8,128], index: 0, kind: input, shape index: {}]
  %s1 = inlined_call_operand.hbm [shape: s32[8,128], index: 1, kind: input, shape index: {}]
  %s2 = inlined_call_operand.hbm [shape: f32[1,8,128], index: 2, kind: output, shape index: {0}]
  %s3 = inlined_call_operand.hbm [shape: f32[1,8,128], index: 3, kind: output, shape index: {1}]
  %4 = xla_tuple %s2, %s3
  %s5 = sld [smem:[#allocation0]]
  $region34: #{tpu_custom_call.1} parent=0
    _
  %s7 = ssub.s32 1, %s5
  %s8 = scalar_select 0, %s7, %s5
  $region1: #{tpu_custom_call.1} parent=0
    #allocation2 [shape = 'u8[8192]{0}', space=vmem, size = 0x2000, scoped, tag = 'input window, operand 0, single buffered']
    #allocation3 [shape = 's32[1]{0}', space=sflag, size = 0x4, scoped, tag = 'scoped memory for tpu_custom_call.1']
    #allocation4 [shape = 's32[1]{0}', space=sflag, size = 0x4, scoped, tag = 'scoped memory for tpu_custom_call.1']
    #allocation5 [shape = 'u8[4096]{0}', space=vmem, size = 0x1000, scoped, tag = 'input window, operand 1, single buffered']
    #allocation6 [shape = 's32[1]{0}', space=sflag, size = 0x4, scoped, tag = 'scoped memory for tpu_custom_call.1']
    #allocation7 [shape = 'u8[4096]{0}', space=vmem, size = 0x1000, scoped, tag = 'output window, operand 0, single buffered']
    #allocation8 [shape = 'u8[4096]{0}', space=vmem, size = 0x1000, scoped, tag = 'output window, operand 1, single buffered']
    #allocation9 [shape = 's32[1]{0}', space=sflag, size = 0x4, scoped, tag = 'scoped memory for tpu_custom_call.1']
    %9 = vsyncpa [#allocation3], 0
    %10 = vsyncpa [#allocation6], 0
    %11 = vsyncpa [#allocation4], 0
    %12 = vsyncpa [#allocation9], 0
    // Predicated region
    $region2: #{tpu_custom_call.1} parent=1 // pred_check
      _
    $region3: #{tpu_custom_call.1} parent=1 // pred_check_branch
      %14 = sbr.rel (0) target = $region5
    $region4: #{tpu_custom_call.1} parent=1 // pred_region
      %16 = vsyncadd [#allocation3], 0
      %s17 = sshll.u32 %s0, 4
      %s18 = int_to_ptr.hbm [resolvable:$true] %s17
      %s19 = sshll.u32 [#allocation2], 4
      %s20 = int_to_ptr.vmem [resolvable:$true] %s19
      %25 = dma.hbm_to_vmem [thread:$0]  %s18, 256, %s20, [#allocation3], 128, 128, 8
    $region5: #{tpu_custom_call.1} parent=1 // pred_fallthru
      _
    // Predicated region
    $region6: #{tpu_custom_call.1} parent=1 // pred_check
      _
    $region7: #{tpu_custom_call.1} parent=1 // pred_check_branch
      %27 = sbr.rel (0) target = $region9
    $region8: #{tpu_custom_call.1} parent=1 // pred_region
      %29 = vsyncadd [#allocation6], 0
      %s31 = sshll.u32 %s1, 4
      %s32 = int_to_ptr.hbm [resolvable:$true] %s31
      %s33 = sshll.u32 [#allocation5], 4
      %s34 = int_to_ptr.vmem [resolvable:$true] %s33
      %36 = dma.hbm_to_vmem [thread:$0]  %s32, 128, %s34, [#allocation6]
    $region9: #{tpu_custom_call.1} parent=1 // pred_fallthru
      _
    // Predicated region
    $region10: #{tpu_custom_call.1} parent=1 // pred_check
      _
    $region11: #{tpu_custom_call.1} parent=1 // pred_check_branch
      %38 = sbr.rel (0) target = $region13
    $region12: #{tpu_custom_call.1} parent=1 // pred_region
      %40 = dma.done [#allocation3], 256
    $region13: #{tpu_custom_call.1} parent=1 // pred_fallthru
      _
    // Predicated region
    $region14: #{tpu_custom_call.1} parent=1 // pred_check
      _
    $region15: #{tpu_custom_call.1} parent=1 // pred_check_branch
      %42 = sbr.rel (0) target = $region17
    $region16: #{tpu_custom_call.1} parent=1 // pred_region
      %44 = dma.done [#allocation6], 128
    $region17: #{tpu_custom_call.1} parent=1 // pred_fallthru
      _
    %v45 = vld [vmem:[#allocation5] sm:$0xff]
    %v46 = vld [vmem:[#allocation2] sm:$0xff]
    %s47 = scalar_lea.vmem [#allocation2], 8
    %v48 = vld [vmem:[%s47] sm:$0xff]
    %v49 = vmax.f32 %v46, %v48
    %v50 = vsub.f32 %v46, %v49
    %v51 = vmul.f32 %v50, 1.442695
    %v52 = vpow.pop %v51
    %vm53 = vcmp.eq.s32.totalorder %v45, 0
    %v54 = vsel %vm53, %v46, 0.0
    %v55 = vsub.f32 %v48, %v49
    %v56 = vmul.f32 %v55, 1.442695
    %v57 = vpow.pop %v56
    %v58 = vadd.f32 %v52, %v57
    %vm59 = vcmp.eq.s32.totalorder %v45, 1
    %v60 = vsel %vm59, %v48, %v54
    %v61 = vlog2.pop %v58
    %v62 = vmul.f32 %v61, 0.6931472
    %v63 = vadd.f32 %v49, %v62
    %vm64 = vcmp.ne.s32.totalorder %v45, 4294967295
    %v65 = vsub.f32 %v63, %v60
    %v66 = vsel %vm64, %v65, 0.0
    %v67 = vsel %vm64, 1.0, 0.0
    %68 = vst [vmem:[#allocation7] sm:$0xff] %v66
    %69 = vst [vmem:[#allocation8] sm:$0xff] %v67
    // Predicated region
    $region18: #{tpu_custom_call.1} parent=1 // pred_check
      _
    $region19: #{tpu_custom_call.1} parent=1 // pred_check_branch
      %71 = sbr.rel (0) target = $region21
    $region20: #{tpu_custom_call.1} parent=1 // pred_region
      %73 = vsyncadd [#allocation4], 0
      %s75 = sshll.u32 [#allocation7], 4
      %s76 = int_to_ptr.vmem [resolvable:$true] %s75
      %s77 = sshll.u32 %s2, 4
      %s78 = int_to_ptr.hbm [resolvable:$true] %s77
      %80 = dma.vmem_to_hbm [thread:$0]  %s76, 128, %s78, [#allocation4]
    $region21: #{tpu_custom_call.1} parent=1 // pred_fallthru
      _
    // Predicated region
    $region22: #{tpu_custom_call.1} parent=1 // pred_check
      _
    $region23: #{tpu_custom_call.1} parent=1 // pred_check_branch
      %82 = sbr.rel (0) target = $region25
    $region24: #{tpu_custom_call.1} parent=1 // pred_region
      %84 = vsyncadd [#allocation9], 0
      %s86 = sshll.u32 [#allocation8], 4
      %s87 = int_to_ptr.vmem [resolvable:$true] %s86
      %s88 = sshll.u32 %s3, 4
      %s89 = int_to_ptr.hbm [resolvable:$true] %s88
      %91 = dma.vmem_to_hbm [thread:$0]  %s87, 128, %s89, [#allocation9]
    $region25: #{tpu_custom_call.1} parent=1 // pred_fallthru
      _
    // Predicated region
    $region26: #{tpu_custom_call.1} parent=1 // pred_check
      _
    $region27: #{tpu_custom_call.1} parent=1 // pred_check_branch
      %93 = sbr.rel (0) target = $region29
    $region28: #{tpu_custom_call.1} parent=1 // pred_region
      %95 = dma.done [#allocation4], 128
    $region29: #{tpu_custom_call.1} parent=1 // pred_fallthru
      _
    // Predicated region
    $region30: #{tpu_custom_call.1} parent=1 // pred_check
      _
    $region31: #{tpu_custom_call.1} parent=1 // pred_check_branch
      %97 = sbr.rel (0) target = $region33
    $region32: #{tpu_custom_call.1} parent=1 // pred_region
      %99 = dma.done [#allocation9], 128
    $region33: #{tpu_custom_call.1} parent=1 // pred_fallthru
      _
    %100 = vsyncpa [#allocation3], 1
    %101 = vsyncpa [#allocation6], 1
    %102 = vsyncpa [#allocation4], 1
    %103 = vsyncpa [#allocation9], 1

</llo_original>
